<compile_context>
chip_gen: v7x
topology: tpu7x:2x2x1
jax: 0.10.0
libtpu: 0.0.40
codegen_flags: <defaults>
</compile_context>

<pallas_src>
import jax
import jax.numpy as jnp
from jax.experimental import pallas as pl
from jax.experimental.pallas import tpu as pltpu


def feature_extractor_kernel(x_ref, w1_ref, b1_ref, w2_ref, b2_ref,
                             w3_ref, b3_ref, f_ref):
    """One batch tile of the MLP forward pass.

    Writes the values the forward hooks would capture, packed lane-dense:
      f_ref[:, 0:H1]          <- fc1 output (pre-activation)
      f_ref[:, H1:H1+H2]      <- fc2 output (pre-activation)
      f_ref[:, H1+H2:]        <- fc3 output, zero-padded to 128 lanes
    """
    h1w = w1_ref.shape[1]
    h2w = w2_ref.shape[1]

    # Cast x -> bf16 in-kernel (halves x HBM traffic vs a wrapper-side cast).
    x = x_ref[...].astype(w1_ref.dtype)

    # fc1 (hooked): bf16 MXU matmul, f32 accumulate, f32 bias-add.
    h1 = jnp.dot(x, w1_ref[...], preferred_element_type=jnp.float32) + b1_ref[...]
    f_ref[:, 0:h1w] = h1.astype(f_ref.dtype)
    a1 = jnp.maximum(h1, 0.0).astype(w2_ref.dtype)  # ReLU in f32, cast for MXU

    # fc2 (hooked)
    h2 = jnp.dot(a1, w2_ref[...], preferred_element_type=jnp.float32) + b2_ref[...]
    f_ref[:, h1w:h1w + h2w] = h2.astype(f_ref.dtype)
    a2 = jnp.maximum(h2, 0.0).astype(w3_ref.dtype)

    # fc3 (hooked; FeatureExtractor discards model(x)'s return value and only returns
    # the hooked features).  w3/b3 are zero-padded to 128 lanes for a lane-dense store.
    h3 = jnp.dot(a2, w3_ref[...], preferred_element_type=jnp.float32) + b3_ref[...]
    f_ref[:, h1w + h2w:] = h3.astype(f_ref.dtype)


def feature_extractor_forward(x, params, tb=None, feature_dtype=jnp.float32):
    """Pallas-backed equivalent of FeatureExtractor(model, ["fc1","fc2","fc3"])(x).

    Returns {layer_id: captured output}, mirroring self._features.
    """
    w1, b1, w2, b2, w3, b3 = (params[k] for k in
                              ("w1", "b1", "w2", "b2", "w3", "b3"))
    B, D = x.shape
    H1 = w1.shape[1]
    H2 = w2.shape[1]
    O = w3.shape[1]

    # Pad the fc3 path to a lane-dense width (>=128, multiple of 128): zero columns
    # and zero bias keep the first O lanes numerically identical.
    OP = max(128, pl.cdiv(O, 128) * 128)
    w3p = jnp.pad(w3, ((0, 0), (0, OP - O))) if OP != O else w3
    b3p = jnp.pad(b3, ((0, 0), (0, OP - O))) if OP != O else b3

    # Batch tile: multiple of 8 (sublane), up to 512 rows (fills 256-wide MXU M on
    # v6e/v7x, amortizes per-step overhead), and chosen so the grid has >= 2 steps
    # whenever B allows (keeps both v7x TensorCores busy).
    b8 = ((B + 7) // 8) * 8
    if tb is None:
        if b8 <= 8:
            tb = 8
        else:
            tb = min(512, ((b8 // 2 + 7) // 8) * 8)
    b_pad = pl.cdiv(B, tb) * tb
    if b_pad != B:
        x = jnp.pad(x, ((0, b_pad - B), (0, 0)))

    # Weights in bf16 for the MXU (tiny, DMA'd once); biases stay f32 (f32 bias-add).
    # x stays in its original dtype and is cast inside the kernel.
    w1b = w1.astype(jnp.bfloat16)
    w2b = w2.astype(jnp.bfloat16)
    w3b = w3p.astype(jnp.bfloat16)

    grid = (b_pad // tb,)

    # Weights/biases: constant block index -> DMA'd once, VMEM-resident across steps.
    const = lambda shape: pl.BlockSpec(shape, lambda i: (0,) * len(shape))

    F_total = H1 + H2 + OP
    flops = 2 * b_pad * (D * H1 + H1 * H2 + H2 * OP)
    bytes_accessed = (x.size * x.dtype.itemsize
                      + (w1b.size + w2b.size + w3b.size) * 2
                      + (b1.size + b2.size + b3p.size) * 4
                      + b_pad * F_total * jnp.dtype(feature_dtype).itemsize)

    f_all = pl.pallas_call(
        feature_extractor_kernel,
        out_shape=jax.ShapeDtypeStruct((b_pad, F_total), feature_dtype),
        grid=grid,
        in_specs=[
            pl.BlockSpec((tb, D), lambda i: (i, 0)),   # x: tiled over batch
            const(w1b.shape), const(b1.shape),
            const(w2b.shape), const(b2.shape),
            const(w3b.shape), const(b3p.shape),
        ],
        out_specs=pl.BlockSpec((tb, F_total), lambda i: (i, 0)),
        compiler_params=pltpu.CompilerParams(
            dimension_semantics=("parallel",),   # shard batch grid across TCs (v7x)
        ),
        cost_estimate=pl.CostEstimate(
            flops=flops, transcendentals=0, bytes_accessed=bytes_accessed),
    )(x, w1b, b1, w2b, b2, w3b, b3p)

    return {
        "fc1": f_all[:B, 0:H1],
        "fc2": f_all[:B, H1:H1 + H2],
        "fc3": f_all[:B, H1 + H2:H1 + H2 + O],
    }


def init_params(key, d_in=32, h1=128, h2=128, d_out=16):
    """Deterministic synthetic parameters. Hidden dims are 128 (lane-width) so the
    MXU tiles are fully occupied and the hooked-feature stores are lane-dense."""
    ks = jax.random.split(key, 6)
    scale = 0.1
    return {
        "w1": scale * jax.random.normal(ks[0], (d_in, h1), jnp.float32),
        "b1": scale * jax.random.normal(ks[1], (1, h1), jnp.float32),
        "w2": scale * jax.random.normal(ks[2], (h1, h2), jnp.float32),
        "b2": scale * jax.random.normal(ks[3], (1, h2), jnp.float32),
        "w3": scale * jax.random.normal(ks[4], (h2, d_out), jnp.float32),
        "b3": scale * jax.random.normal(ks[5], (1, d_out), jnp.float32),
    }


def reference_forward(x, params):
    """Pure-JAX reference of the hooked features, matching the kernel's numerics
    (bf16 inputs/weights, f32 accumulation and elementwise)."""
    xb = x.astype(jnp.bfloat16)
    w1 = params["w1"].astype(jnp.bfloat16)
    w2 = params["w2"].astype(jnp.bfloat16)
    w3 = params["w3"].astype(jnp.bfloat16)
    h1 = jnp.dot(xb, w1, preferred_element_type=jnp.float32) + params["b1"]
    a1 = jnp.maximum(h1, 0.0).astype(jnp.bfloat16)
    h2 = jnp.dot(a1, w2, preferred_element_type=jnp.float32) + params["b2"]
    a2 = jnp.maximum(h2, 0.0).astype(jnp.bfloat16)
    h3 = jnp.dot(a2, w3, preferred_element_type=jnp.float32) + params["b3"]
    return {"fc1": h1, "fc2": h2, "fc3": h3}


if __name__ == "__main__":
    key = jax.random.PRNGKey(0)
    k_x, k_p = jax.random.split(key)

    # Small test shapes: B=20 (exercises batch padding + a multi-step grid with the
    # default tb heuristic), D=32 input features, 128-wide hidden layers, 16-dim head.
    B, D, H1, H2, O = 20, 32, 128, 128, 16
    x = jax.random.normal(k_x, (B, D), jnp.float32)
    params = init_params(k_p, d_in=D, h1=H1, h2=H2, d_out=O)

    feats = feature_extractor_forward(x, params)
    jax.block_until_ready(feats)

    ref = reference_forward(x, params)
    for name in ("fc1", "fc2", "fc3"):
        assert feats[name].shape == ref[name].shape, name
        assert jnp.allclose(feats[name], ref[name], atol=1e-2, rtol=1e-2), name

    print("KERNEL_OK")
</pallas_src>

<mosaic_0001>
module attributes {stable_mosaic.version = 11 : i64} {
  func.func @feature_extractor_kernel(%arg0: i32, %arg1: memref<16x32xf32, #tpu.memory_space<vmem>>, %arg2: memref<32x128xbf16, #tpu.memory_space<vmem>>, %arg3: memref<1x128xf32, #tpu.memory_space<vmem>>, %arg4: memref<128x128xbf16, #tpu.memory_space<vmem>>, %arg5: memref<1x128xf32, #tpu.memory_space<vmem>>, %arg6: memref<128x128xbf16, #tpu.memory_space<vmem>>, %arg7: memref<1x128xf32, #tpu.memory_space<vmem>>, %arg8: memref<16x384xf32, #tpu.memory_space<vmem>>) attributes {dimension_semantics = [#tpu.dimension_semantics<parallel>], iteration_bounds = array<i64: 2>, scalar_prefetch = 0 : i64, scratch_operands = 0 : i64, tpu.core_type = #tpu.core_type<tc>, window_params = [{transform_indices = @transform_0, window_bounds = array<i64: 16, 32>}, {pipeline_mode = #tpu.pipeline_mode<synchronous>, transform_indices = @transform_1, window_bounds = array<i64: 32, 128>}, {pipeline_mode = #tpu.pipeline_mode<synchronous>, transform_indices = @transform_2, window_bounds = array<i64: 1, 128>}, {pipeline_mode = #tpu.pipeline_mode<synchronous>, transform_indices = @transform_3, window_bounds = array<i64: 128, 128>}, {pipeline_mode = #tpu.pipeline_mode<synchronous>, transform_indices = @transform_4, window_bounds = array<i64: 1, 128>}, {pipeline_mode = #tpu.pipeline_mode<synchronous>, transform_indices = @transform_5, window_bounds = array<i64: 128, 128>}, {pipeline_mode = #tpu.pipeline_mode<synchronous>, transform_indices = @transform_6, window_bounds = array<i64: 1, 128>}, {transform_indices = @transform_7, window_bounds = array<i64: 16, 384>}]} {
    %c0 = arith.constant 0 : index
    %c0_0 = arith.constant 0 : index
    %0 = vector.load %arg1[%c0, %c0_0] : memref<16x32xf32, #tpu.memory_space<vmem>>, vector<16x32xf32>
    %1 = arith.truncf %0 : vector<16x32xf32> to vector<16x32xbf16>
    %c0_1 = arith.constant 0 : index
    %c0_2 = arith.constant 0 : index
    %2 = vector.load %arg2[%c0_1, %c0_2] : memref<32x128xbf16, #tpu.memory_space<vmem>>, vector<32x128xbf16>
    %cst = arith.constant dense<0.000000e+00> : vector<16x128xf32>
    %3 = tpu.matmul %1, %2, %cst {dimension_numbers = #tpu.dot_dimension_numbers<[1], [0], [0], [1], [0, 0, 1, 1], [], []>} : vector<16x32xbf16>, vector<32x128xbf16>, vector<16x128xf32> -> vector<16x128xf32>
    %c0_3 = arith.constant 0 : index
    %c0_4 = arith.constant 0 : index
    %4 = vector.load %arg3[%c0_3, %c0_4] : memref<1x128xf32, #tpu.memory_space<vmem>>, vector<1x128xf32>
    %5 = vector.broadcast %4 : vector<1x128xf32> to vector<16x128xf32>
    %6 = arith.addf %3, %5 : vector<16x128xf32>
    %c0_5 = arith.constant 0 : index
    %c0_6 = arith.constant 0 : index
    %7 = vector.load %arg8[%c0_5, %c0_6] : memref<16x384xf32, #tpu.memory_space<vmem>>, vector<16x128xf32>
    tpu.vector_store %arg8[%c0_5, %c0_6], %6 {strides = array<i32>} : memref<16x384xf32, #tpu.memory_space<vmem>>, vector<16x128xf32>,
    %cst_7 = arith.constant 0.000000e+00 : f32
    %8 = vector.broadcast %cst_7 : f32 to vector<16x128xf32>
    %9 = arith.maximumf %6, %8 : vector<16x128xf32>
    %10 = arith.truncf %9 : vector<16x128xf32> to vector<16x128xbf16>
    %c0_8 = arith.constant 0 : index
    %c0_9 = arith.constant 0 : index
    %11 = vector.load %arg4[%c0_8, %c0_9] : memref<128x128xbf16, #tpu.memory_space<vmem>>, vector<128x128xbf16>
    %cst_10 = arith.constant dense<0.000000e+00> : vector<16x128xf32>
    %12 = tpu.matmul %10, %11, %cst_10 {dimension_numbers = #tpu.dot_dimension_numbers<[1], [0], [0], [1], [0, 0, 1, 1], [], []>} : vector<16x128xbf16>, vector<128x128xbf16>, vector<16x128xf32> -> vector<16x128xf32>
    %c0_11 = arith.constant 0 : index
    %c0_12 = arith.constant 0 : index
    %13 = vector.load %arg5[%c0_11, %c0_12] : memref<1x128xf32, #tpu.memory_space<vmem>>, vector<1x128xf32>
    %14 = vector.broadcast %13 : vector<1x128xf32> to vector<16x128xf32>
    %15 = arith.addf %12, %14 : vector<16x128xf32>
    %c0_13 = arith.constant 0 : index
    %c128 = arith.constant 128 : index
    %16 = vector.load %arg8[%c0_13, %c128] : memref<16x384xf32, #tpu.memory_space<vmem>>, vector<16x128xf32>
    tpu.vector_store %arg8[%c0_13, %c128], %15 {strides = array<i32>} : memref<16x384xf32, #tpu.memory_space<vmem>>, vector<16x128xf32>,
    %cst_14 = arith.constant 0.000000e+00 : f32
    %17 = vector.broadcast %cst_14 : f32 to vector<16x128xf32>
    %18 = arith.maximumf %15, %17 : vector<16x128xf32>
    %19 = arith.truncf %18 : vector<16x128xf32> to vector<16x128xbf16>
    %c0_15 = arith.constant 0 : index
    %c0_16 = arith.constant 0 : index
    %20 = vector.load %arg6[%c0_15, %c0_16] : memref<128x128xbf16, #tpu.memory_space<vmem>>, vector<128x128xbf16>
    %cst_17 = arith.constant dense<0.000000e+00> : vector<16x128xf32>
    %21 = tpu.matmul %19, %20, %cst_17 {dimension_numbers = #tpu.dot_dimension_numbers<[1], [0], [0], [1], [0, 0, 1, 1], [], []>} : vector<16x128xbf16>, vector<128x128xbf16>, vector<16x128xf32> -> vector<16x128xf32>
    %c0_18 = arith.constant 0 : index
    %c0_19 = arith.constant 0 : index
    %22 = vector.load %arg7[%c0_18, %c0_19] : memref<1x128xf32, #tpu.memory_space<vmem>>, vector<1x128xf32>
    %23 = vector.broadcast %22 : vector<1x128xf32> to vector<16x128xf32>
    %24 = arith.addf %21, %23 : vector<16x128xf32>
    %c0_20 = arith.constant 0 : index
    %c256 = arith.constant 256 : index
    %25 = vector.load %arg8[%c0_20, %c256] : memref<16x384xf32, #tpu.memory_space<vmem>>, vector<16x128xf32>
    tpu.vector_store %arg8[%c0_20, %c256], %24 {strides = array<i32>} : memref<16x384xf32, #tpu.memory_space<vmem>>, vector<16x128xf32>,
    return
  }
  func.func @transform_0(%arg0: i32) -> (i32, i32) {
    %c0_i32 = arith.constant 0 : i32
    %c0_i32_0 = arith.constant 0 : i32
    return %arg0, %c0_i32 : i32, i32
  }
  func.func @transform_1(%arg0: i32) -> (i32, i32) {
    %c0_i32 = arith.constant 0 : i32
    %c0_i32_0 = arith.constant 0 : i32
    %c0_i32_1 = arith.constant 0 : i32
    return %c0_i32, %c0_i32_0 : i32, i32
  }
  func.func @transform_2(%arg0: i32) -> (i32, i32) {
    %c0_i32 = arith.constant 0 : i32
    %c0_i32_0 = arith.constant 0 : i32
    %c0_i32_1 = arith.constant 0 : i32
    return %c0_i32, %c0_i32_0 : i32, i32
  }
  func.func @transform_3(%arg0: i32) -> (i32, i32) {
    %c0_i32 = arith.constant 0 : i32
    %c0_i32_0 = arith.constant 0 : i32
    %c0_i32_1 = arith.constant 0 : i32
    return %c0_i32, %c0_i32_0 : i32, i32
  }
  func.func @transform_4(%arg0: i32) -> (i32, i32) {
    %c0_i32 = arith.constant 0 : i32
    %c0_i32_0 = arith.constant 0 : i32
    %c0_i32_1 = arith.constant 0 : i32
    return %c0_i32, %c0_i32_0 : i32, i32
  }
  func.func @transform_5(%arg0: i32) -> (i32, i32) {
    %c0_i32 = arith.constant 0 : i32
    %c0_i32_0 = arith.constant 0 : i32
    %c0_i32_1 = arith.constant 0 : i32
    return %c0_i32, %c0_i32_0 : i32, i32
  }
  func.func @transform_6(%arg0: i32) -> (i32, i32) {
    %c0_i32 = arith.constant 0 : i32
    %c0_i32_0 = arith.constant 0 : i32
    %c0_i32_1 = arith.constant 0 : i32
    return %c0_i32, %c0_i32_0 : i32, i32
  }
  func.func @transform_7(%arg0: i32) -> (i32, i32) {
    %c0_i32 = arith.constant 0 : i32
    %c0_i32_0 = arith.constant 0 : i32
    return %arg0, %c0_i32 : i32, i32
  }
}

</mosaic_0001>

<llo_original>
// kernel: tpu_custom_call.1
$region0: #{tpu_custom_call.1}
  #allocation0 [shape = 'u32[]', space=smem, size = 0x4, offset = 0x4, fixed_abs, tag = 'smem constant byte address 0x4 - core index']
  #allocation1 [shape = 'u32[144,128]{1,0:T(1,128)}', space=vmem, size = 0x12000, scoped, tag = 'internal scratch']
  %s0 = inlined_call_operand.hbm [shape: f32[32,32], index: 0, kind: input, shape index: {}]
  %s1 = inlined_call_operand.hbm [shape: bf16[32,128], index: 1, kind: input, shape index: {}]
  %s2 = inlined_call_operand.vmem [shape: f32[1,128], index: 2, kind: input, shape index: {}]
  %s3 = inlined_call_operand.hbm [shape: bf16[128,128], index: 3, kind: input, shape index: {}]
  %s4 = inlined_call_operand.vmem [shape: f32[1,128], index: 4, kind: input, shape index: {}]
  %s5 = inlined_call_operand.hbm [shape: bf16[128,128], index: 5, kind: input, shape index: {}]
  %s6 = inlined_call_operand.vmem [shape: f32[1,128], index: 6, kind: input, shape index: {}]
  %s7 = inlined_call_operand.hbm [shape: f32[32,384], index: 7, kind: output, shape index: {}]
  %s8 = sld [smem:[#allocation0]]
  $region77: #{tpu_custom_call.1} parent=0
    _
  %s10 = ssub.s32 1, %s8
  %s11 = scalar_select 0, %s10, %s8
  $region1: #{tpu_custom_call.1} parent=0
    #allocation2 [shape = 'u8[16384]{0}', space=vmem, size = 0x4000, scoped, tag = 'input window, operand 0']
    #allocation3 [shape = 's32[2]{0}', space=sflag, size = 0x8, scoped, tag = 'scoped memory for tpu_custom_call.1']
    #allocation4 [shape = 's32[2]{0}', space=sflag, size = 0x8, scoped, tag = 'scoped memory for tpu_custom_call.1']
    #allocation5 [shape = 'u8[8192]{0}', space=vmem, size = 0x2000, scoped, tag = 'input window, operand 1, single buffered']
    #allocation6 [shape = 's32[1]{0}', space=sflag, size = 0x4, scoped, tag = 'scoped memory for tpu_custom_call.1']
    #allocation7 [shape = 'u8[32768]{0}', space=vmem, size = 0x8000, scoped, tag = 'input window, operand 3, single buffered']
    #allocation8 [shape = 'u8[32768]{0}', space=vmem, size = 0x8000, scoped, tag = 'input window, operand 5, single buffered']
    #allocation9 [shape = 's32[1]{0}', space=sflag, size = 0x4, scoped, tag = 'scoped memory for tpu_custom_call.1']
    #allocation10 [shape = 'u8[49152]{0}', space=vmem, size = 0xc000, scoped, tag = 'output window, operand 0']
    %12 = vsyncpa [#allocation3], 0
    %s13 = scalar_lea.sflag [#allocation3], 1
    %14 = vsyncpa %s13, 0
    %15 = vsyncpa [#allocation6], 0
    %16 = vsyncpa [#allocation9], 0
    %17 = vsyncpa [#allocation4], 0
    %s18 = scalar_lea.sflag [#allocation4], 1
    %19 = vsyncpa %s18, 0
    loop: start=0, step=1, limit=4
    $region2: #{tpu_custom_call.1} parent=1 // loop_pre_header
      _
    $region3: #{tpu_custom_call.1} parent=1 // loop_header
      %s21 = sphi 0, %s25
      %p22 = scmp.ge.s32.totalorder %s21, 4
      %s31 = sphi 0, %s33
      %s34 = sphi 0, %s31
      %s35 = sphi 0, %s34
      %s51 = sphi 0, %s35
      %s55 = sphi 0, %s55
      %s57 = sphi 0, %s55
      %s58 = sphi 0, %s57
      %s72 = sphi 0, %s58
      %s76 = sphi 0, %s76
      %s78 = sphi 0, %s76
      %s79 = sphi 0, %s78
      %s93 = sphi 0, %s79
      %s97 = sphi 0, %s97
      %s99 = sphi 0, %s97
      %s100 = sphi 0, %s99
      %s114 = sphi 0, %s100
      %s118 = sphi 0, %s118
      %s120 = sphi 0, %s118
      %s121 = sphi 0, %s120
      %s135 = sphi 0, %s121
      %s139 = sphi 0, %s139
      %s141 = sphi 0, %s139
      %s142 = sphi 0, %s141
      %s156 = sphi 0, %s142
      %s160 = sphi 0, %s160
      %s162 = sphi 0, %s160
      %s163 = sphi 0, %s162
      %s177 = sphi 0, %s163
      %s183 = sphi 0, %s185
      %s186 = sphi 0, %s183
      %s187 = sphi 0, %s186
      %s203 = sphi 0, %s187
    $region4: #{tpu_custom_call.1} parent=1 // loop_header_branch
      %24 = sbr.rel (%p22) target = $region8
    $region5: #{tpu_custom_call.1} parent=1 // loop_body
      %s26 = ssub.s32 %s21, 1
      %s27 = ssub.s32 %s21, 2
      %s28 = sadd.s32 %s21, 1
      %s29 = ssub.s32 %s21, %s28
      %p30 = scmp.eq.s32.totalorder %s29, 0
      %s32 = sadd.s32 %s31, 1
      %s33 = scalar_select %p30, %s31, %s32
      %p36 = pneg %p30
      %p37 = scmp.eq.s32.totalorder %s21, 1
      %p38 = por %p36, %p37
      %p39 = scmp.ne.s32.totalorder %s31, %s34
      %p40 = scmp.eq.s32.totalorder %s21, 0
      %p41 = por %p39, %p40
      %p42 = scmp.ne.s32.totalorder %s31, %s34
      %p43 = scmp.eq.s32.totalorder %s26, 1
      %p44 = por %p42, %p43
      %p45 = scmp.ne.s32.totalorder %s34, %s35
      %p46 = scmp.eq.s32.totalorder %s26, 0
      %p47 = por %p45, %p46
      %p48 = scmp.ne.s32.totalorder %s34, %s35
      %p49 = scmp.eq.s32.totalorder %s27, 1
      %p50 = por %p48, %p49
      %p52 = scmp.ne.s32.totalorder %s35, %s51
      %p53 = scmp.eq.s32.totalorder %s27, 0
      %p54 = por %p52, %p53
      %s56 = sadd.s32 %s55, 1
      %p59 = scmp.eq.s32.totalorder %s21, 1
      %p60 = scmp.ne.s32.totalorder %s55, %s57
      %p61 = scmp.eq.s32.totalorder %s21, 0
      %p62 = por %p60, %p61
      %p63 = scmp.ne.s32.totalorder %s55, %s57
      %p64 = scmp.eq.s32.totalorder %s26, 1
      %p65 = por %p63, %p64
      %p66 = scmp.ne.s32.totalorder %s57, %s58
      %p67 = scmp.eq.s32.totalorder %s26, 0
      %p68 = por %p66, %p67
      %p69 = scmp.ne.s32.totalorder %s57, %s58
      %p70 = scmp.eq.s32.totalorder %s27, 1
      %p71 = por %p69, %p70
      %p73 = scmp.ne.s32.totalorder %s58, %s72
      %p74 = scmp.eq.s32.totalorder %s27, 0
      %p75 = por %p73, %p74
      %s77 = sadd.s32 %s76, 1
      %p80 = scmp.eq.s32.totalorder %s21, 1
      %p81 = scmp.ne.s32.totalorder %s76, %s78
      %p82 = scmp.eq.s32.totalorder %s21, 0
      %p83 = por %p81, %p82
      %p84 = scmp.ne.s32.totalorder %s76, %s78
      %p85 = scmp.eq.s32.totalorder %s26, 1
      %p86 = por %p84, %p85
      %p87 = scmp.ne.s32.totalorder %s78, %s79
      %p88 = scmp.eq.s32.totalorder %s26, 0
      %p89 = por %p87, %p88
      %p90 = scmp.ne.s32.totalorder %s78, %s79
      %p91 = scmp.eq.s32.totalorder %s27, 1
      %p92 = por %p90, %p91
      %p94 = scmp.ne.s32.totalorder %s79, %s93
      %p95 = scmp.eq.s32.totalorder %s27, 0
      %p96 = por %p94, %p95
      %s98 = sadd.s32 %s97, 1
      %p101 = scmp.eq.s32.totalorder %s21, 1
      %p102 = scmp.ne.s32.totalorder %s97, %s99
      %p103 = scmp.eq.s32.totalorder %s21, 0
      %p104 = por %p102, %p103
      %p105 = scmp.ne.s32.totalorder %s97, %s99
      %p106 = scmp.eq.s32.totalorder %s26, 1
      %p107 = por %p105, %p106
      %p108 = scmp.ne.s32.totalorder %s99, %s100
      %p109 = scmp.eq.s32.totalorder %s26, 0
      %p110 = por %p108, %p109
      %p111 = scmp.ne.s32.totalorder %s99, %s100
      %p112 = scmp.eq.s32.totalorder %s27, 1
      %p113 = por %p111, %p112
      %p115 = scmp.ne.s32.totalorder %s100, %s114
      %p116 = scmp.eq.s32.totalorder %s27, 0
      %p117 = por %p115, %p116
      %s119 = sadd.s32 %s118, 1
      %p122 = scmp.eq.s32.totalorder %s21, 1
      %p123 = scmp.ne.s32.totalorder %s118, %s120
      %p124 = scmp.eq.s32.totalorder %s21, 0
      %p125 = por %p123, %p124
      %p126 = scmp.ne.s32.totalorder %s118, %s120
      %p127 = scmp.eq.s32.totalorder %s26, 1
      %p128 = por %p126, %p127
      %p129 = scmp.ne.s32.totalorder %s120, %s121
      %p130 = scmp.eq.s32.totalorder %s26, 0
      %p131 = por %p129, %p130
      %p132 = scmp.ne.s32.totalorder %s120, %s121
      %p133 = scmp.eq.s32.totalorder %s27, 1
      %p134 = por %p132, %p133
      %p136 = scmp.ne.s32.totalorder %s121, %s135
      %p137 = scmp.eq.s32.totalorder %s27, 0
      %p138 = por %p136, %p137
      %s140 = sadd.s32 %s139, 1
      %p143 = scmp.eq.s32.totalorder %s21, 1
      %p144 = scmp.ne.s32.totalorder %s139, %s141
      %p145 = scmp.eq.s32.totalorder %s21, 0
      %p146 = por %p144, %p145
      %p147 = scmp.ne.s32.totalorder %s139, %s141
      %p148 = scmp.eq.s32.totalorder %s26, 1
      %p149 = por %p147, %p148
      %p150 = scmp.ne.s32.totalorder %s141, %s142
      %p151 = scmp.eq.s32.totalorder %s26, 0
      %p152 = por %p150, %p151
      %p153 = scmp.ne.s32.totalorder %s141, %s142
      %p154 = scmp.eq.s32.totalorder %s27, 1
      %p155 = por %p153, %p154
      %p157 = scmp.ne.s32.totalorder %s142, %s156
      %p158 = scmp.eq.s32.totalorder %s27, 0
      %p159 = por %p157, %p158
      %s161 = sadd.s32 %s160, 1
      %p164 = scmp.eq.s32.totalorder %s21, 1
      %p165 = scmp.ne.s32.totalorder %s160, %s162
      %p166 = scmp.eq.s32.totalorder %s21, 0
      %p167 = por %p165, %p166
      %p168 = scmp.ne.s32.totalorder %s160, %s162
      %p169 = scmp.eq.s32.totalorder %s26, 1
      %p170 = por %p168, %p169
      %p171 = scmp.ne.s32.totalorder %s162, %s163
      %p172 = scmp.eq.s32.totalorder %s26, 0
      %p173 = por %p171, %p172
      %p174 = scmp.ne.s32.totalorder %s162, %s163
      %p175 = scmp.eq.s32.totalorder %s27, 1
      %p176 = por %p174, %p175
      %p178 = scmp.ne.s32.totalorder %s163, %s177
      %p179 = scmp.eq.s32.totalorder %s27, 0
      %p180 = por %p178, %p179
      %s181 = ssub.s32 %s21, %s28
      %p182 = scmp.eq.s32.totalorder %s181, 0
      %s184 = sadd.s32 %s183, 1
      %s185 = scalar_select %p182, %s183, %s184
      %p188 = pneg %p182
      %p189 = scmp.eq.s32.totalorder %s21, 1
      %p190 = por %p188, %p189
      %p191 = scmp.ne.s32.totalorder %s183, %s186
      %p192 = scmp.eq.s32.totalorder %s21, 0
      %p193 = por %p191, %p192
      %p194 = scmp.ne.s32.totalorder %s183, %s186
      %p195 = scmp.eq.s32.totalorder %s26, 1
      %p196 = por %p194, %p195
      %p197 = scmp.ne.s32.totalorder %s186, %s187
      %p198 = scmp.eq.s32.totalorder %s26, 0
      %p199 = por %p197, %p198
      %p200 = scmp.ne.s32.totalorder %s186, %s187
      %p201 = scmp.eq.s32.totalorder %s27, 1
      %p202 = por %p200, %p201
      %p204 = scmp.ne.s32.totalorder %s187, %s203
      %p205 = scmp.eq.s32.totalorder %s27, 0
      %p206 = por %p204, %p205
      %p207 = scmp.le.s32.totalorder 1, %s21
      %p208 = scmp.lt.s32.totalorder %s21, 3
      %p209 = pnand %p207, %p208
      %p210 = pneg %p209
      // Predicated region
      $region9: #{tpu_custom_call.1} parent=5 // pred_check
        _
      $region10: #{tpu_custom_call.1} parent=5 // pred_check_branch
        %212 = sbr.rel (%p209) target = $region12
      $region11: #{tpu_custom_call.1} parent=5 // pred_region
        %s213 = ssub.s32 %s21, 1
        // Predicated region
        $region13: #{tpu_custom_call.1} parent=11 // pred_check
          %p214 = pneg %p68
        $region14: #{tpu_custom_call.1} parent=11 // pred_check_branch
          %216 = sbr.rel (%p214) target = $region16
        $region15: #{tpu_custom_call.1} parent=11 // pred_region
          %s218 = ssub.s32 256, 256
          %219 = vsyncadd [#allocation6], %s218
          %s220 = sshll.u32 [#allocation5], 4
          %s221 = int_to_ptr.vmem [resolvable:$true] %s220
          %226 = dma.hbm_to_vmem [thread:$0]  %s1, 256, %s221, [#allocation6], 64, 64, 4
        $region16: #{tpu_custom_call.1} parent=11 // pred_fallthru
          _
        // Predicated region
        $region17: #{tpu_custom_call.1} parent=11 // pred_check
          %p227 = pneg %p89
        $region18: #{tpu_custom_call.1} parent=11 // pred_check_branch
          %229 = sbr.rel (%p227) target = $region20
        $region19: #{tpu_custom_call.1} parent=11 // pred_region
          _
        $region20: #{tpu_custom_call.1} parent=11 // pred_fallthru
          _
        // Predicated region
        $region21: #{tpu_custom_call.1} parent=11 // pred_check
          %p230 = pneg %p110
        $region22: #{tpu_custom_call.1} parent=11 // pred_check_branch
          %232 = sbr.rel (%p230) target = $region24
        $region23: #{tpu_custom_call.1} parent=11 // pred_region
          %s234 = ssub.s32 1024, 1024
          %235 = vsyncadd [#allocation6], %s234
          %s236 = sshll.u32 [#allocation7], 4
          %s237 = int_to_ptr.vmem [resolvable:$true] %s236
          %242 = dma.hbm_to_vmem [thread:$0]  %s3, 1024, %s237, [#allocation6], 64, 64, 4
        $region24: #{tpu_custom_call.1} parent=11 // pred_fallthru
          _
        // Predicated region
        $region25: #{tpu_custom_call.1} parent=11 // pred_check
          %p243 = pneg %p131
        $region26: #{tpu_custom_call.1} parent=11 // pred_check_branch
          %245 = sbr.rel (%p243) target = $region28
        $region27: #{tpu_custom_call.1} parent=11 // pred_region
          _
        $region28: #{tpu_custom_call.1} parent=11 // pred_fallthru
          _
        // Predicated region
        $region29: #{tpu_custom_call.1} parent=11 // pred_check
          %p246 = pneg %p152
        $region30: #{tpu_custom_call.1} parent=11 // pred_check_branch
          %248 = sbr.rel (%p246) target = $region32
        $region31: #{tpu_custom_call.1} parent=11 // pred_region
          %s250 = ssub.s32 1024, 1024
          %251 = vsyncadd [#allocation9], %s250
          %s252 = sshll.u32 [#allocation8], 4
          %s253 = int_to_ptr.vmem [resolvable:$true] %s252
          %258 = dma.hbm_to_vmem [thread:$0]  %s5, 1024, %s253, [#allocation9], 64, 64, 4
        $region32: #{tpu_custom_call.1} parent=11 // pred_fallthru
          _
        // Predicated region
        $region33: #{tpu_custom_call.1} parent=11 // pred_check
          %p259 = pneg %p173
        $region34: #{tpu_custom_call.1} parent=11 // pred_check_branch
          %261 = sbr.rel (%p259) target = $region36
        $region35: #{tpu_custom_call.1} parent=11 // pred_region
          _
        $region36: #{tpu_custom_call.1} parent=11 // pred_fallthru
          _
      $region12: #{tpu_custom_call.1} parent=5 // pred_fallthru
        _
      %p262 = scmp.lt.s32.totalorder %s21, 2
      // Predicated region
      $region37: #{tpu_custom_call.1} parent=5 // pred_check
        %p263 = pneg %p262
      $region38: #{tpu_custom_call.1} parent=5 // pred_check_branch
        %265 = sbr.rel (%p263) target = $region40
      $region39: #{tpu_custom_call.1} parent=5 // pred_region
        // Predicated region
        $region41: #{tpu_custom_call.1} parent=39 // pred_check
          %p266 = pneg %p41
        $region42: #{tpu_custom_call.1} parent=39 // pred_check_branch
          %268 = sbr.rel (%p266) target = $region44
        $region43: #{tpu_custom_call.1} parent=39 // pred_region
          %s269 = sand.u32 %s31, 1
          %s270 = scalar_lea.sflag [#allocation3], %s269
          %s271 = sand.u32 %s31, 1
          %s272 = smul.addr %s271, 16
          %s273 = scalar_lea.vmem [#allocation2], %s272
          %s274 = smul.u32 2, %s21
          %s276 = ssub.s32 256, 256
          %277 = vsyncadd %s270, %s276
          %s278 = smul.addr %s274, 128
          %s279 = scalar_lea.hbm %s0, %s278
          %s280 = sshll.u32 %s273, 4
          %s281 = int_to_ptr.vmem [resolvable:$true] %s280
          %286 = dma.hbm_to_vmem [thread:$0]  %s279, 256, %s281, %s270, 128, 128, 8
        $region44: #{tpu_custom_call.1} parent=39 // pred_fallthru
          _
      $region40: #{tpu_custom_call.1} parent=5 // pred_fallthru
        _
      %p287 = scmp.le.s32.totalorder 1, %s21
      %p288 = scmp.lt.s32.totalorder %s21, 3
      %p289 = pnand %p287, %p288
      %p290 = pneg %p289
      // Predicated region
      $region45: #{tpu_custom_call.1} parent=5 // pred_check
        _
      $region46: #{tpu_custom_call.1} parent=5 // pred_check_branch
        %292 = sbr.rel (%p289) target = $region48
      $region47: #{tpu_custom_call.1} parent=5 // pred_region
        %s293 = ssub.s32 %s21, 1
        %s294 = sand.u32 %s34, 1
        %s295 = scalar_lea.sflag [#allocation3], %s294
        %s296 = sand.u32 %s34, 1
        %s297 = smul.addr %s296, 16
        %s298 = scalar_lea.vmem [#allocation2], %s297
        // Predicated region
        $region49: #{tpu_custom_call.1} parent=47 // pred_check
          %p299 = pneg %p47
        $region50: #{tpu_custom_call.1} parent=47 // pred_check_branch
          %301 = sbr.rel (%p299) target = $region52
        $region51: #{tpu_custom_call.1} parent=47 // pred_region
          %302 = dma.done %s295, 256
        $region52: #{tpu_custom_call.1} parent=47 // pred_fallthru
          _
        // Predicated region
        $region53: #{tpu_custom_call.1} parent=47 // pred_check
          %p303 = pneg %p68
        $region54: #{tpu_custom_call.1} parent=47 // pred_check_branch
          %305 = sbr.rel (%p303) target = $region56
        $region55: #{tpu_custom_call.1} parent=47 // pred_region
          %306 = dma.done [#allocation6], 256
        $region56: #{tpu_custom_call.1} parent=47 // pred_fallthru
          _
        // Predicated region
        $region57: #{tpu_custom_call.1} parent=47 // pred_check
          %p307 = pneg %p110
        $region58: #{tpu_custom_call.1} parent=47 // pred_check_branch
          %309 = sbr.rel (%p307) target = $region60
        $region59: #{tpu_custom_call.1} parent=47 // pred_region
          %310 = dma.done [#allocation6], 1024
        $region60: #{tpu_custom_call.1} parent=47 // pred_fallthru
          _
        // Predicated region
        $region61: #{tpu_custom_call.1} parent=47 // pred_check
          %p311 = pneg %p152
        $region62: #{tpu_custom_call.1} parent=47 // pred_check_branch
          %313 = sbr.rel (%p311) target = $region64
        $region63: #{tpu_custom_call.1} parent=47 // pred_region
          %314 = dma.done [#allocation9], 1024
        $region64: #{tpu_custom_call.1} parent=47 // pred_fallthru
          _
        %s315 = sand.u32 %s34, 1
        %s316 = scalar_lea.sflag [#allocation3], %s315
        %s317 = sand.u32 %s34, 1
        %s318 = smul.addr %s317, 16
        %s319 = scalar_lea.vmem [#allocation2], %s318
        %p320 = pneg %p47
        %p321 = pneg %p44
        %p322 = pneg %p68
        %p323 = pneg %p65
        %p324 = pneg %p89
        %p325 = pneg %p86
        %p326 = pneg %p110
        %p327 = pneg %p107
        %p328 = pneg %p131
        %p329 = pneg %p128
        %p330 = pneg %p152
        %p331 = pneg %p149
        %p332 = pneg %p173
        %p333 = pneg %p170
        %p334 = pneg %p199
        %p335 = pneg %p196
        %s336 = sand.u32 %s186, 1
        %s337 = scalar_lea.sflag [#allocation4], %s336
        %s338 = sand.u32 %s186, 1
        %s339 = smul.addr %s338, 48
        %s340 = scalar_lea.vmem [#allocation10], %s339
        %s341 = smul.u32 2, %s26
        %s342 = smul.u32 2, %s26
        %v344 = vld [vmem:[%s298] sm:$0xff]
        %v345 = vld [vmem:[%s298 + $0x8] sm:$0xff]
        %v346 = vpack.c.bf16 %v345, %v344
        %v347 = vld [vmem:[#allocation5] sm:$0xf]
        %v348 = vld [vmem:[#allocation5 + $0x4] sm:$0xf]
        %v349 = vld [vmem:[#allocation5 + $0x8] sm:$0xf]
        %v350 = vld [vmem:[#allocation5 + $0xc] sm:$0xf]
        %v351 = vld [vmem:[%s2] sm:$0x1]
        %v353 = vlaneseq
        %v354 = vshrl.u32 %v353, 7
        %v355 = vsub.s32 0, %v354
        %v356 = vrot.slane %v351, %v355
        %v362 = vunpack.c.l.b16 %v347
        %v363 = vunpack.c.l.b16 %v348
        %v364 = vunpack.c.l.b16 %v349
        %v365 = vunpack.c.l.b16 %v350
        %v366 = vpack.c.b16 %v363, %v362
        %v367 = vpack.c.b16 %v365, %v364
        %vm370 = vcmask 261120
        %v372 = vsel %vm370, %v346, 0
        %374 = vmatprep.subr.bf16.mxu0 0
        %375 = vmatpush1.bf16.msra.mxu0 %v366
        %376 = vmatprep.subr.bf16.mxu0 0
        %377 = vmatpush1.bf16.msra.mxu0 %v367
        %378 = vmatprep.subr.bf16.mxu0 0
        %379 = vmatpush1.bf16.msra.mxu0 0
        %380 = vmatprep.subr.bf16.mxu0 0
        %381 = vmatpush1.bf16.msra.mxu0 0
        %382 = vmatprep.subr.bf16.mxu0 0
        %383 = vmatpush1.bf16.msra.mxu0 0
        %384 = vmatprep.subr.bf16.mxu0 0
        %385 = vmatpush1.bf16.msra.mxu0 0
        %386 = vmatprep.subr.bf16.mxu0 0
        %387 = vmatpush1.bf16.msra.mxu0 0
        %388 = vmatprep.subr.bf16.mxu0 0
        %389 = vmatpush1.bf16.msra.mxu0 0
        %390 = vmatprep.subr.bf16.mxu0 0
        %391 = vmatpush1.bf16.msra.mxu0 0
        %392 = vmatprep.subr.bf16.mxu0 0
        %393 = vmatpush1.bf16.msra.mxu0 0
        %394 = vmatprep.subr.bf16.mxu0 0
        %395 = vmatpush1.bf16.msra.mxu0 0
        %396 = vmatprep.subr.bf16.mxu0 0
        %397 = vmatpush1.bf16.msra.mxu0 0
        %398 = vmatprep.subr.bf16.mxu0 0
        %399 = vmatpush1.bf16.msra.mxu0 0
        %400 = vmatprep.subr.bf16.mxu0 0
        %401 = vmatpush1.bf16.msra.mxu0 0
        %402 = vmatprep.subr.bf16.mxu0 0
        %403 = vmatpush1.bf16.msra.mxu0 0
        %404 = vmatprep.subr.bf16.mxu0 0
        %405 = vmatpush1.bf16.msra.mxu0 0
        %406 = vmatprep.mubr.bf16.mxu0 0
        %407 = vmatmul.mubr.bf16.gmra.mrb[0].mxu0 %v372
        %v408 = vpop.f32.mrb[0].mxu0
        %v409 = vadd.f32 %v356, %v408
        %v410 = vpop.f32.mrb[0].mxu0
        %v411 = vpop.f32.mrb[0].mxu0
        %v412 = vadd.f32 %v356, %v411
        %v413 = vpop.f32.mrb[0].mxu0
        %414 = vdwg.mxu0
        %415 = vst [vmem:[%s340] sm:$0xff] %v409
        %416 = vst [vmem:[%s340 + $0x18] sm:$0xff] %v412
        %v417 = vmax.f32 %v409, 0.0
        %v418 = vmax.f32 %v412, 0.0
        %v419 = vpack.c.bf16 %v418, %v417
        %v420 = vld [vmem:[#allocation7] sm:$0xf]
        %v421 = vld [vmem:[#allocation7 + $0x4] sm:$0xf]
        %v422 = vld [vmem:[#allocation7 + $0x8] sm:$0xf]
        %v423 = vld [vmem:[#allocation7 + $0xc] sm:$0xf]
        %v424 = vld [vmem:[#allocation7 + $0x10] sm:$0xf]
        %v425 = vld [vmem:[#allocation7 + $0x14] sm:$0xf]
        %v426 = vld [vmem:[#allocation7 + $0x18] sm:$0xf]
        %v427 = vld [vmem:[#allocation7 + $0x1c] sm:$0xf]
        %v428 = vld [vmem:[#allocation7 + $0x20] sm:$0xf]
        %v429 = vld [vmem:[#allocation7 + $0x24] sm:$0xf]
        %v430 = vld [vmem:[#allocation7 + $0x28] sm:$0xf]
        %v431 = vld [vmem:[#allocation7 + $0x2c] sm:$0xf]
        %v432 = vld [vmem:[#allocation7 + $0x30] sm:$0xf]
        %v433 = vld [vmem:[#allocation7 + $0x34] sm:$0xf]
        %v434 = vld [vmem:[#allocation7 + $0x38] sm:$0xf]
        %v435 = vld [vmem:[#allocation7 + $0x3c] sm:$0xf]
        %v436 = vld [vmem:[%s4] sm:$0x1]
        %v438 = vlaneseq
        %v439 = vshrl.u32 %v438, 7
        %v440 = vsub.s32 0, %v439
        %v441 = vrot.slane %v436, %v440
        %v459 = vunpack.c.l.b16 %v420
        %v460 = vunpack.c.l.b16 %v421
        %v461 = vunpack.c.l.b16 %v422
        %v462 = vunpack.c.l.b16 %v423
        %v463 = vunpack.c.l.b16 %v424
        %v464 = vunpack.c.l.b16 %v425
        %v465 = vunpack.c.l.b16 %v426
        %v466 = vunpack.c.l.b16 %v427
        %v467 = vunpack.c.l.b16 %v428
        %v468 = vunpack.c.l.b16 %v429
        %v469 = vunpack.c.l.b16 %v430
        %v470 = vunpack.c.l.b16 %v431
        %v471 = vunpack.c.l.b16 %v432
        %v472 = vunpack.c.l.b16 %v433
        %v473 = vunpack.c.l.b16 %v434
        %v474 = vunpack.c.l.b16 %v435
        %v475 = vpack.c.b16 %v460, %v459
        %v476 = vpack.c.b16 %v462, %v461
        %v477 = vpack.c.b16 %v464, %v463
        %v478 = vpack.c.b16 %v466, %v465
        %v479 = vpack.c.b16 %v468, %v467
        %v480 = vpack.c.b16 %v470, %v469
        %v481 = vpack.c.b16 %v472, %v471
        %v482 = vpack.c.b16 %v474, %v473
        %491 = vmatprep.subr.bf16.mxu0 0
        %492 = vmatpush1.bf16.msra.mxu0 %v475
        %493 = vmatprep.subr.bf16.mxu0 0
        %494 = vmatpush1.bf16.msra.mxu0 %v476
        %495 = vmatprep.subr.bf16.mxu0 0
        %496 = vmatpush1.bf16.msra.mxu0 %v477
        %497 = vmatprep.subr.bf16.mxu0 0
        %498 = vmatpush1.bf16.msra.mxu0 %v478
        %499 = vmatprep.subr.bf16.mxu0 0
        %500 = vmatpush1.bf16.msra.mxu0 %v479
        %501 = vmatprep.subr.bf16.mxu0 0
        %502 = vmatpush1.bf16.msra.mxu0 %v480
        %503 = vmatprep.subr.bf16.mxu0 0
        %504 = vmatpush1.bf16.msra.mxu0 %v481
        %505 = vmatprep.subr.bf16.mxu0 0
        %506 = vmatpush1.bf16.msra.mxu0 %v482
        %507 = vmatprep.subr.bf16.mxu0 0
        %508 = vmatpush1.bf16.msra.mxu0 0
        %509 = vmatprep.subr.bf16.mxu0 0
        %510 = vmatpush1.bf16.msra.mxu0 0
        %511 = vmatprep.subr.bf16.mxu0 0
        %512 = vmatpush1.bf16.msra.mxu0 0
        %513 = vmatprep.subr.bf16.mxu0 0
        %514 = vmatpush1.bf16.msra.mxu0 0
        %515 = vmatprep.subr.bf16.mxu0 0
        %516 = vmatpush1.bf16.msra.mxu0 0
        %517 = vmatprep.subr.bf16.mxu0 0
        %518 = vmatpush1.bf16.msra.mxu0 0
        %519 = vmatprep.subr.bf16.mxu0 0
        %520 = vmatpush1.bf16.msra.mxu0 0
        %521 = vmatprep.subr.bf16.mxu0 0
        %522 = vmatpush1.bf16.msra.mxu0 0
        %523 = vmatprep.mubr.bf16.mxu0 0
        %524 = vmatmul.mubr.bf16.gmra.mrb[0].mxu0 %v419
        %v525 = vpop.f32.mrb[0].mxu0
        %v526 = vadd.f32 %v441, %v525
        %v527 = vpop.f32.mrb[0].mxu0
        %v528 = vpop.f32.mrb[0].mxu0
        %v529 = vadd.f32 %v441, %v528
        %v530 = vpop.f32.mrb[0].mxu0
        %531 = vdwg.mxu0
        %532 = vst [vmem:[%s340 + $0x8] sm:$0xff] %v526
        %533 = vst [vmem:[%s340 + $0x20] sm:$0xff] %v529
        %v534 = vmax.f32 %v526, 0.0
        %v535 = vmax.f32 %v529, 0.0
        %v536 = vpack.c.bf16 %v535, %v534
        %v537 = vld [vmem:[#allocation8] sm:$0xf]
        %v538 = vld [vmem:[#allocation8 + $0x4] sm:$0xf]
        %v539 = vld [vmem:[#allocation8 + $0x8] sm:$0xf]
        %v540 = vld [vmem:[#allocation8 + $0xc] sm:$0xf]
        %v541 = vld [vmem:[#allocation8 + $0x10] sm:$0xf]
        %v542 = vld [vmem:[#allocation8 + $0x14] sm:$0xf]
        %v543 = vld [vmem:[#allocation8 + $0x18] sm:$0xf]
        %v544 = vld [vmem:[#allocation8 + $0x1c] sm:$0xf]
        %v545 = vld [vmem:[#allocation8 + $0x20] sm:$0xf]
        %v546 = vld [vmem:[#allocation8 + $0x24] sm:$0xf]
        %v547 = vld [vmem:[#allocation8 + $0x28] sm:$0xf]
        %v548 = vld [vmem:[#allocation8 + $0x2c] sm:$0xf]
        %v549 = vld [vmem:[#allocation8 + $0x30] sm:$0xf]
        %v550 = vld [vmem:[#allocation8 + $0x34] sm:$0xf]
        %v551 = vld [vmem:[#allocation8 + $0x38] sm:$0xf]
        %v552 = vld [vmem:[#allocation8 + $0x3c] sm:$0xf]
        %v553 = vld [vmem:[%s6] sm:$0x1]
        %v555 = vlaneseq
        %v556 = vshrl.u32 %v555, 7
        %v557 = vsub.s32 0, %v556
        %v558 = vrot.slane %v553, %v557
        %v576 = vunpack.c.l.b16 %v537
        %v577 = vunpack.c.l.b16 %v538
        %v578 = vunpack.c.l.b16 %v539
        %v579 = vunpack.c.l.b16 %v540
        %v580 = vunpack.c.l.b16 %v541
        %v581 = vunpack.c.l.b16 %v542
        %v582 = vunpack.c.l.b16 %v543
        %v583 = vunpack.c.l.b16 %v544
        %v584 = vunpack.c.l.b16 %v545
        %v585 = vunpack.c.l.b16 %v546
        %v586 = vunpack.c.l.b16 %v547
        %v587 = vunpack.c.l.b16 %v548
        %v588 = vunpack.c.l.b16 %v549
        %v589 = vunpack.c.l.b16 %v550
        %v590 = vunpack.c.l.b16 %v551
        %v591 = vunpack.c.l.b16 %v552
        %v592 = vpack.c.b16 %v577, %v576
        %v593 = vpack.c.b16 %v579, %v578
        %v594 = vpack.c.b16 %v581, %v580
        %v595 = vpack.c.b16 %v583, %v582
        %v596 = vpack.c.b16 %v585, %v584
        %v597 = vpack.c.b16 %v587, %v586
        %v598 = vpack.c.b16 %v589, %v588
        %v599 = vpack.c.b16 %v591, %v590
        %608 = vmatprep.subr.bf16.mxu0 0
        %609 = vmatpush1.bf16.msra.mxu0 %v592
        %610 = vmatprep.subr.bf16.mxu0 0
        %611 = vmatpush1.bf16.msra.mxu0 %v593
        %612 = vmatprep.subr.bf16.mxu0 0
        %613 = vmatpush1.bf16.msra.mxu0 %v594
        %614 = vmatprep.subr.bf16.mxu0 0
        %615 = vmatpush1.bf16.msra.mxu0 %v595
        %616 = vmatprep.subr.bf16.mxu0 0
        %617 = vmatpush1.bf16.msra.mxu0 %v596
        %618 = vmatprep.subr.bf16.mxu0 0
        %619 = vmatpush1.bf16.msra.mxu0 %v597
        %620 = vmatprep.subr.bf16.mxu0 0
        %621 = vmatpush1.bf16.msra.mxu0 %v598
        %622 = vmatprep.subr.bf16.mxu0 0
        %623 = vmatpush1.bf16.msra.mxu0 %v599
        %624 = vmatprep.subr.bf16.mxu0 0
        %625 = vmatpush1.bf16.msra.mxu0 0
        %626 = vmatprep.subr.bf16.mxu0 0
        %627 = vmatpush1.bf16.msra.mxu0 0
        %628 = vmatprep.subr.bf16.mxu0 0
        %629 = vmatpush1.bf16.msra.mxu0 0
        %630 = vmatprep.subr.bf16.mxu0 0
        %631 = vmatpush1.bf16.msra.mxu0 0
        %632 = vmatprep.subr.bf16.mxu0 0
        %633 = vmatpush1.bf16.msra.mxu0 0
        %634 = vmatprep.subr.bf16.mxu0 0
        %635 = vmatpush1.bf16.msra.mxu0 0
        %636 = vmatprep.subr.bf16.mxu0 0
        %637 = vmatpush1.bf16.msra.mxu0 0
        %638 = vmatprep.subr.bf16.mxu0 0
        %639 = vmatpush1.bf16.msra.mxu0 0
        %640 = vmatprep.mubr.bf16.mxu0 0
        %641 = vmatmul.mubr.bf16.gmra.mrb[0].mxu0 %v536
        %v642 = vpop.f32.mrb[0].mxu0
        %v643 = vadd.f32 %v558, %v642
        %v644 = vpop.f32.mrb[0].mxu0
        %v645 = vpop.f32.mrb[0].mxu0
        %v646 = vadd.f32 %v558, %v645
        %v647 = vpop.f32.mrb[0].mxu0
        %648 = vdwg.mxu0
        %649 = vst [vmem:[%s340 + $0x10] sm:$0xff] %v643
        %650 = vst [vmem:[%s340 + $0x28] sm:$0xff] %v646
        %s651 = sand.u32 %s186, 1
        %s652 = scalar_lea.sflag [#allocation4], %s651
        %s653 = sand.u32 %s186, 1
        %s654 = smul.addr %s653, 48
        %s655 = scalar_lea.vmem [#allocation10], %s654
        // Predicated region
        $region65: #{tpu_custom_call.1} parent=47 // pred_check
          %p656 = pneg %p196
        $region66: #{tpu_custom_call.1} parent=47 // pred_check_branch
          %658 = sbr.rel (%p656) target = $region68
        $region67: #{tpu_custom_call.1} parent=47 // pred_region
          %s659 = smul.u32 2, %s26
          %s661 = ssub.s32 768, 768
          %662 = vsyncadd %s652, %s661
          %s663 = smul.addr %s659, 3
          %s664 = smul.addr %s663, 128
          %s665 = scalar_lea.hbm %s7, %s664
          %s666 = sshll.u32 %s655, 4
          %s667 = int_to_ptr.vmem [resolvable:$true] %s666
          %672 = dma.vmem_to_hbm [thread:$0]  %s667, 768, %s665, %s652, 384, 384, 24
        $region68: #{tpu_custom_call.1} parent=47 // pred_fallthru
          _
      $region48: #{tpu_custom_call.1} parent=5 // pred_fallthru
        _
      %p673 = scmp.le.s32.totalorder 2, %s21
      // Predicated region
      $region69: #{tpu_custom_call.1} parent=5 // pred_check
        %p674 = pneg %p673
      $region70: #{tpu_custom_call.1} parent=5 // pred_check_branch
        %676 = sbr.rel (%p674) target = $region72
      $region71: #{tpu_custom_call.1} parent=5 // pred_region
        %s677 = ssub.s32 %s21, 2
        // Predicated region
        $region73: #{tpu_custom_call.1} parent=71 // pred_check
          %p678 = pneg %p202
        $region74: #{tpu_custom_call.1} parent=71 // pred_check_branch
          %680 = sbr.rel (%p678) target = $region76
        $region75: #{tpu_custom_call.1} parent=71 // pred_region
          %s681 = sand.u32 %s187, 1
          %s682 = scalar_lea.sflag [#allocation4], %s681
          %s683 = sand.u32 %s187, 1
          %s684 = smul.addr %s683, 48
          %s685 = scalar_lea.vmem [#allocation10], %s684
          %686 = dma.done %s682, 768
        $region76: #{tpu_custom_call.1} parent=71 // pred_fallthru
          _
      $region72: #{tpu_custom_call.1} parent=5 // pred_fallthru
        _
    $region6: #{tpu_custom_call.1} parent=1 // loop_footer
      %s25 = sadd.s32 1, %s21
    $region7: #{tpu_custom_call.1} parent=1 // loop_footer_branch
      %20 = sbr.rel target = $region3
    $region8: #{tpu_custom_call.1} parent=1 // loop_exit
      _
    %687 = vsyncpa [#allocation3], 1
    %s688 = scalar_lea.sflag [#allocation3], 1
    %689 = vsyncpa %s688, 1
    %690 = vsyncpa [#allocation6], 1
    %691 = vsyncpa [#allocation9], 1
    %692 = vsyncpa [#allocation4], 1
    %s693 = scalar_lea.sflag [#allocation4], 1
    %694 = vsyncpa %s693, 1

</llo_original>
